<compile_context>
chip_gen: v5e
topology: v5e:2x2
jax: 0.10.0
libtpu: 0.0.40
codegen_flags: <defaults>
</compile_context>

<pallas_src>
import functools

import jax
import jax.numpy as jnp
from jax.experimental import pallas as pl
from jax.experimental.pallas import tpu as pltpu


def _softmax_temp_kernel(x_ref, o_ref, *, temperature):
    # One (tile_b, N) block: numerically stable softmax along the lane axis.
    x = x_ref[...].astype(jnp.float32) / temperature
    m = jnp.max(x, axis=-1, keepdims=True)
    e = jnp.exp(x - m)
    s = jnp.sum(e, axis=-1, keepdims=True)
    # Exact divide: the kernel is HBM-bound so this is free, and it keeps the
    # row sums at 1.0 to f32 precision (approx reciprocal did not).
    o_ref[...] = (e / s).astype(o_ref.dtype)


def _choose_tile_b(B, N, itemsize):
    """Row tile: biggest block that keeps ~2 MiB of f32 work per step, stays
    VMEM-friendly on v7x (64 MiB), and leaves >= 2 grid steps when B allows
    (megacore sharding of the "parallel" batch axis)."""
    row_mult = 16 if itemsize == 2 else 8        # bf16 packs 16 sublanes
    if B <= row_mult:
        return B                                 # full-extent block; always legal
    target_f32_elems = 512 * 1024                # ~2 MiB f32 per block
    tile_b = max(row_mult, (target_f32_elems // max(N, 1)) // row_mult * row_mult)
    tile_b = min(tile_b, pl.cdiv(B, row_mult) * row_mult)
    if B >= 2 * row_mult:
        # Keep at least 2 grid steps so both TensorCores get work on v7x.
        tile_b = min(tile_b, max(row_mult, (B // 2) // row_mult * row_mult))
    return tile_b


def _softmax2d(x, temperature):
    """x: (B, N); softmax over the last axis after dividing by temperature."""
    B, N = x.shape
    dtype = x.dtype
    itemsize = jnp.dtype(dtype).itemsize

    tile_b = _choose_tile_b(B, N, itemsize)
    grid = (pl.cdiv(B, tile_b),)

    # VMEM budget: double-buffered input + output tiles + ~3 f32 temporaries.
    tile_io_bytes = tile_b * N * itemsize
    tile_f32_bytes = tile_b * N * 4
    vmem_est = 4 * tile_io_bytes + 3 * tile_f32_bytes
    vmem_limit = int(min(max(2 * vmem_est, 16 * 2**20), 48 * 2**20))

    # TODO(synk): for vocab-sized N where even an (8, N) f32 block cannot fit
    # VMEM, add an N-tiled ("arbitrary") online-softmax pass instead of
    # shrinking tile_b.

    kernel = functools.partial(_softmax_temp_kernel, temperature=float(temperature))
    return pl.pallas_call(
        kernel,
        out_shape=jax.ShapeDtypeStruct((B, N), dtype),
        grid=grid,
        in_specs=[pl.BlockSpec((tile_b, N), lambda i: (i, 0))],
        out_specs=pl.BlockSpec((tile_b, N), lambda i: (i, 0)),
        compiler_params=pltpu.CompilerParams(
            dimension_semantics=("parallel",),
            vmem_limit_bytes=vmem_limit,
        ),
    )(x)


def softmax_with_temperature(x, temperature):
    """Equivalent of SoftmaxWithTemperature.forward: softmax(x / T, dim=1)."""
    if x.ndim == 2:
        return _softmax2d(x, temperature)
    # torch.nn.Softmax(dim=1) on higher-rank input: move the softmax axis to
    # the lane (last) position, flatten the rest, run the 2D kernel, undo.
    xm = jnp.moveaxis(x, 1, -1)
    lead = xm.shape[:-1]
    out2 = _softmax2d(xm.reshape(-1, xm.shape[-1]), temperature)
    return jnp.moveaxis(out2.reshape(*lead, xm.shape[-1]), -1, 1)


if __name__ == "__main__":
    temperature = 2.5  # module __init__ arg; deterministic in-script

    # f32 path: ragged B (not a multiple of 8) and ragged N (not a multiple of
    # 128) to exercise the partial-block masking.
    key = jax.random.PRNGKey(0)
    B, N = 50, 200
    x = jax.random.normal(key, (B, N), dtype=jnp.float32)
    out = jax.block_until_ready(softmax_with_temperature(x, temperature))
    ref = jax.nn.softmax(x / temperature, axis=1)
    assert out.shape == ref.shape
    assert jnp.allclose(out, ref, atol=1e-4, rtol=1e-4), "f32 mismatch vs reference"
    assert jnp.allclose(jnp.sum(out, axis=1), 1.0, atol=1e-4), "rows must sum to 1"

    # bf16 path: HBM traffic stays bf16; math is f32 in-kernel.
    kb = jax.random.PRNGKey(1)
    xb = jax.random.normal(kb, (32, 128), dtype=jnp.bfloat16)
    outb = jax.block_until_ready(softmax_with_temperature(xb, temperature))
    refb = jax.nn.softmax(xb.astype(jnp.float32) / temperature, axis=1)
    assert jnp.allclose(outb.astype(jnp.float32), refb, atol=1e-2, rtol=1e-2), (
        "bf16 mismatch vs reference"
    )

    # 3D path (softmax over dim=1, per the torch module).
    k3 = jax.random.PRNGKey(2)
    x3 = jax.random.normal(k3, (4, 6, 10), dtype=jnp.float32)
    out3 = jax.block_until_ready(softmax_with_temperature(x3, temperature))
    ref3 = jax.nn.softmax(x3 / temperature, axis=1)
    assert jnp.allclose(out3, ref3, atol=1e-4, rtol=1e-4), "3D mismatch vs reference"

    print("KERNEL_OK")
</pallas_src>

<mosaic_0001>
module attributes {stable_mosaic.version = 11 : i64} {
  func.func @_softmax_temp_kernel(%arg0: i32, %arg1: memref<24x200xf32, #tpu.memory_space<vmem>>, %arg2: memref<24x200xf32, #tpu.memory_space<vmem>>) attributes {dimension_semantics = [#tpu.dimension_semantics<parallel>], iteration_bounds = array<i64: 3>, scalar_prefetch = 0 : i64, scratch_operands = 0 : i64, tpu.core_type = #tpu.core_type<tc>, window_params = [{transform_indices = @transform_0, window_bounds = array<i64: 24, 200>}, {transform_indices = @transform_1, window_bounds = array<i64: 24, 200>}]} {
    %c0 = arith.constant 0 : index
    %c0_0 = arith.constant 0 : index
    %0 = vector.load %arg1[%c0, %c0_0] : memref<24x200xf32, #tpu.memory_space<vmem>>, vector<24x200xf32>
    %cst = arith.constant 2.500000e+00 : f32
    %1 = vector.broadcast %cst : f32 to vector<24x200xf32>
    %2 = arith.divf %0, %1 : vector<24x200xf32>
    %cst_1 = arith.constant dense<0xFF800000> : vector<24xf32>
    %3 = vector.multi_reduction <maximumf>, %2, %cst_1 [1] : vector<24x200xf32> to vector<24xf32>
    %4 = vector.shape_cast %3 : vector<24xf32> to vector<24x1xf32>
    %5 = vector.broadcast %4 : vector<24x1xf32> to vector<24x200xf32>
    %6 = arith.subf %2, %5 : vector<24x200xf32>
    %7 = math.exp %6 : vector<24x200xf32>
    %cst_2 = arith.constant dense<0.000000e+00> : vector<24xf32>
    %8 = vector.multi_reduction <add>, %7, %cst_2 [1] : vector<24x200xf32> to vector<24xf32>
    %9 = vector.shape_cast %8 : vector<24xf32> to vector<24x1xf32>
    %10 = vector.broadcast %9 : vector<24x1xf32> to vector<24x200xf32>
    %11 = arith.divf %7, %10 : vector<24x200xf32>
    %c0_3 = arith.constant 0 : index
    %c0_4 = arith.constant 0 : index
    %12 = vector.load %arg2[%c0_3, %c0_4] : memref<24x200xf32, #tpu.memory_space<vmem>>, vector<24x200xf32>
    tpu.vector_store %arg2[%c0_3, %c0_4], %11 {strides = array<i32>} : memref<24x200xf32, #tpu.memory_space<vmem>>, vector<24x200xf32>,
    return
  }
  func.func @transform_0(%arg0: i32) -> (i32, i32) {
    %c0_i32 = arith.constant 0 : i32
    %c0_i32_0 = arith.constant 0 : i32
    return %arg0, %c0_i32 : i32, i32
  }
  func.func @transform_1(%arg0: i32) -> (i32, i32) {
    %c0_i32 = arith.constant 0 : i32
    %c0_i32_0 = arith.constant 0 : i32
    return %arg0, %c0_i32 : i32, i32
  }
}

</mosaic_0001>

<llo_original>
// kernel: tpu_custom_call.1
$region0: #{tpu_custom_call.1}
  #allocation0 [shape = 'u32[]', space=smem, size = 0x4, offset = 0x4, fixed_abs, tag = 'smem constant byte address 0x4 - core index']
  #allocation1 [shape = 'u32[72,128]{1,0:T(1,128)}', space=vmem, size = 0x9000, scoped, tag = 'internal scratch']
  %s0 = inlined_call_operand.hbm [shape: f32[50,200], index: 0, kind: input, shape index: {}]
  %s1 = inlined_call_operand.hbm [shape: f32[50,200], index: 1, kind: output, shape index: {}]
  %s2 = sld [smem:[#allocation0]]
  $region41: #{tpu_custom_call.1} parent=0
    _
  %s4 = ssub.s32 1, %s2
  %s5 = scalar_select 0, %s4, %s2
  $region1: #{tpu_custom_call.1} parent=0
    #allocation2 [shape = 'u8[49152]{0}', space=vmem, size = 0xc000, scoped, tag = 'input window, operand 0']
    #allocation3 [shape = 's32[2]{0}', space=sflag, size = 0x8, scoped, tag = 'scoped memory for tpu_custom_call.1']
    #allocation4 [shape = 's32[2]{0}', space=sflag, size = 0x8, scoped, tag = 'scoped memory for tpu_custom_call.1']
    #allocation5 [shape = 'u8[49152]{0}', space=vmem, size = 0xc000, scoped, tag = 'output window, operand 0']
    %6 = vsyncpa [#allocation3], 0
    %s7 = scalar_lea.sflag [#allocation3], 1
    %8 = vsyncpa %s7, 0
    %9 = vsyncpa [#allocation4], 0
    %s10 = scalar_lea.sflag [#allocation4], 1
    %11 = vsyncpa %s10, 0
    loop: start=0, step=1, limit=5
    $region2: #{tpu_custom_call.1} parent=1 // loop_pre_header
      _
    $region3: #{tpu_custom_call.1} parent=1 // loop_header
      %s13 = sphi 0, %s17
      %p14 = scmp.ge.s32.totalorder %s13, 5
      %s23 = sphi 0, %s25
      %s26 = sphi 0, %s23
      %s27 = sphi 0, %s26
      %s43 = sphi 0, %s27
      %s49 = sphi 0, %s51
      %s52 = sphi 0, %s49
      %s53 = sphi 0, %s52
      %s69 = sphi 0, %s53
    $region4: #{tpu_custom_call.1} parent=1 // loop_header_branch
      %16 = sbr.rel (%p14) target = $region8
    $region5: #{tpu_custom_call.1} parent=1 // loop_body
      %s18 = ssub.s32 %s13, 1
      %s19 = ssub.s32 %s13, 2
      %s20 = sadd.s32 %s13, 1
      %s21 = ssub.s32 %s13, %s20
      %p22 = scmp.eq.s32.totalorder %s21, 0
      %s24 = sadd.s32 %s23, 1
      %s25 = scalar_select %p22, %s23, %s24
      %p28 = pneg %p22
      %p29 = scmp.eq.s32.totalorder %s13, 2
      %p30 = por %p28, %p29
      %p31 = scmp.ne.s32.totalorder %s23, %s26
      %p32 = scmp.eq.s32.totalorder %s13, 0
      %p33 = por %p31, %p32
      %p34 = scmp.ne.s32.totalorder %s23, %s26
      %p35 = scmp.eq.s32.totalorder %s18, 2
      %p36 = por %p34, %p35
      %p37 = scmp.ne.s32.totalorder %s26, %s27
      %p38 = scmp.eq.s32.totalorder %s18, 0
      %p39 = por %p37, %p38
      %p40 = scmp.ne.s32.totalorder %s26, %s27
      %p41 = scmp.eq.s32.totalorder %s19, 2
      %p42 = por %p40, %p41
      %p44 = scmp.ne.s32.totalorder %s27, %s43
      %p45 = scmp.eq.s32.totalorder %s19, 0
      %p46 = por %p44, %p45
      %s47 = ssub.s32 %s13, %s20
      %p48 = scmp.eq.s32.totalorder %s47, 0
      %s50 = sadd.s32 %s49, 1
      %s51 = scalar_select %p48, %s49, %s50
      %p54 = pneg %p48
      %p55 = scmp.eq.s32.totalorder %s13, 2
      %p56 = por %p54, %p55
      %p57 = scmp.ne.s32.totalorder %s49, %s52
      %p58 = scmp.eq.s32.totalorder %s13, 0
      %p59 = por %p57, %p58
      %p60 = scmp.ne.s32.totalorder %s49, %s52
      %p61 = scmp.eq.s32.totalorder %s18, 2
      %p62 = por %p60, %p61
      %p63 = scmp.ne.s32.totalorder %s52, %s53
      %p64 = scmp.eq.s32.totalorder %s18, 0
      %p65 = por %p63, %p64
      %p66 = scmp.ne.s32.totalorder %s52, %s53
      %p67 = scmp.eq.s32.totalorder %s19, 2
      %p68 = por %p66, %p67
      %p70 = scmp.ne.s32.totalorder %s53, %s69
      %p71 = scmp.eq.s32.totalorder %s19, 0
      %p72 = por %p70, %p71
      %p73 = scmp.le.s32.totalorder 1, %s13
      %p74 = scmp.lt.s32.totalorder %s13, 4
      %p75 = pnand %p73, %p74
      %p76 = pneg %p75
      // Predicated region
      $region9: #{tpu_custom_call.1} parent=5 // pred_check
        _
      $region10: #{tpu_custom_call.1} parent=5 // pred_check_branch
        %78 = sbr.rel (%p75) target = $region12
      $region11: #{tpu_custom_call.1} parent=5 // pred_region
        %s79 = ssub.s32 %s13, 1
      $region12: #{tpu_custom_call.1} parent=5 // pred_fallthru
        _
      %p80 = scmp.lt.s32.totalorder %s13, 3
      // Predicated region
      $region13: #{tpu_custom_call.1} parent=5 // pred_check
        %p81 = pneg %p80
      $region14: #{tpu_custom_call.1} parent=5 // pred_check_branch
        %83 = sbr.rel (%p81) target = $region16
      $region15: #{tpu_custom_call.1} parent=5 // pred_region
        // Predicated region
        $region17: #{tpu_custom_call.1} parent=15 // pred_check
          %p84 = pneg %p33
        $region18: #{tpu_custom_call.1} parent=15 // pred_check_branch
          %86 = sbr.rel (%p84) target = $region20
        $region19: #{tpu_custom_call.1} parent=15 // pred_region
          %s87 = sand.u32 %s23, 1
          %s88 = scalar_lea.sflag [#allocation3], %s87
          %s89 = sand.u32 %s23, 1
          %s90 = smul.addr %s89, 48
          %s91 = scalar_lea.vmem [#allocation2], %s90
          %s92 = smul.u32 3, %s13
          %s93 = ssub.s32 7, %s92
          %p94 = scmp.lt.s32.totalorder %s93, 3
          %s95 = scalar_select %p94, %s93, 3
          %s96 = smul.u32 8, %s95
          %s97 = smul.u32 %s96, 2
          %s98 = ssub.s32 48, %s97
          %s99 = sshll.u32 %s98, 4
          %100 = vsyncadd %s88, %s99
          %p101 = scmp.ne.s32.totalorder 0, %s97
          %s102 = smul.addr %s92, 2
          %s103 = smul.addr %s102, 8
          %s104 = scalar_lea.hbm %s0, %s103
          %s105 = smul.u32 16, %s95
          %s106 = sshll.u32 %s104, 4
          %s107 = int_to_ptr.hbm [resolvable:$true] %s106
          %s108 = sshll.u32 %s91, 4
          %s109 = int_to_ptr.vmem [resolvable:$true] %s108
          %s110 = sshll.u32 %s105, 4
          %114 = dma.hbm_to_vmem [thread:$0]  (%p101), %s107, %s110, %s109, %s88, 256, 256, 16
        $region20: #{tpu_custom_call.1} parent=15 // pred_fallthru
          _
      $region16: #{tpu_custom_call.1} parent=5 // pred_fallthru
        _
      %p115 = scmp.le.s32.totalorder 1, %s13
      %p116 = scmp.lt.s32.totalorder %s13, 4
      %p117 = pnand %p115, %p116
      %p118 = pneg %p117
      // Predicated region
      $region21: #{tpu_custom_call.1} parent=5 // pred_check
        _
      $region22: #{tpu_custom_call.1} parent=5 // pred_check_branch
        %120 = sbr.rel (%p117) target = $region24
      $region23: #{tpu_custom_call.1} parent=5 // pred_region
        %s121 = ssub.s32 %s13, 1
        %s122 = sand.u32 %s26, 1
        %s123 = scalar_lea.sflag [#allocation3], %s122
        %s124 = sand.u32 %s26, 1
        %s125 = smul.addr %s124, 48
        %s126 = scalar_lea.vmem [#allocation2], %s125
        // Predicated region
        $region25: #{tpu_custom_call.1} parent=23 // pred_check
          %p127 = pneg %p39
        $region26: #{tpu_custom_call.1} parent=23 // pred_check_branch
          %129 = sbr.rel (%p127) target = $region28
        $region27: #{tpu_custom_call.1} parent=23 // pred_region
          %131 = dma.done %s123, 768
        $region28: #{tpu_custom_call.1} parent=23 // pred_fallthru
          _
        %s132 = sand.u32 %s26, 1
        %s133 = scalar_lea.sflag [#allocation3], %s132
        %s134 = sand.u32 %s26, 1
        %s135 = smul.addr %s134, 48
        %s136 = scalar_lea.vmem [#allocation2], %s135
        %p137 = pneg %p39
        %p138 = pneg %p36
        %p139 = pneg %p65
        %p140 = pneg %p62
        %s141 = sand.u32 %s52, 1
        %s142 = scalar_lea.sflag [#allocation4], %s141
        %s143 = sand.u32 %s52, 1
        %s144 = smul.addr %s143, 48
        %s145 = scalar_lea.vmem [#allocation5], %s144
        %s146 = smul.u32 3, %s18
        %s147 = ssub.s32 7, %s146
        %p148 = scmp.lt.s32.totalorder %s147, 3
        %s149 = scalar_select %p148, %s147, 3
        %s150 = smul.u32 8, %s149
        %s151 = smul.u32 %s150, 2
        %s152 = smul.u32 3, %s18
        %s153 = ssub.s32 7, %s152
        %p154 = scmp.lt.s32.totalorder %s153, 3
        %s155 = scalar_select %p154, %s153, 3
        %s156 = smul.u32 8, %s155
        %s157 = smul.u32 %s156, 2
        %v158 = vld [vmem:[%s126] sm:$0xff]
        %v159 = vld [vmem:[%s126 + $0x8] sm:$0xff]
        %v160 = vld [vmem:[%s126 + $0x10] sm:$0xff]
        %v161 = vld [vmem:[%s126 + $0x18] sm:$0xff]
        %v162 = vld [vmem:[%s126 + $0x20] sm:$0xff]
        %v163 = vld [vmem:[%s126 + $0x28] sm:$0xff]
        %v164 = vrcp.pop 2.5
        %v165 = vmul.f32 2.5, %v164
        %v166 = vsub.f32 1.0, %v165
        %v167 = vmul.f32 %v164, %v166
        %v168 = vadd.f32 %v164, %v167
        %vm169 = vweird.f32 %v164
        %v170 = vsel %vm169, %v164, %v168
        %v171 = vmul.f32 %v158, %v170
        %v172 = vmul.f32 %v159, %v170
        %v173 = vmul.f32 %v160, %v170
        %v174 = vmul.f32 %v161, %v170
        %v175 = vmul.f32 %v162, %v170
        %v176 = vmul.f32 %v163, %v170
        %vm177 = vcmask 588800
        %v178 = vsel %vm177, %v172, -inf
        %v179 = vmax.f32 %v171, %v178
        %180 = vmax.xlane.f32.xlu0 %v179
        %v181 = vpop.xlane.xlu0 %180
        %v182 = vsel %vm177, %v174, -inf
        %v183 = vmax.f32 %v173, %v182
        %184 = vmax.xlane.f32.xlu0 %v183
        %v185 = vpop.xlane.xlu0 %184
        %v186 = vsel %vm177, %v176, -inf
        %v187 = vmax.f32 %v175, %v186
        %188 = vmax.xlane.f32.xlu0 %v187
        %v189 = vpop.xlane.xlu0 %188
        %v190 = vsub.f32 %v171, %v181
        %v191 = vsub.f32 %v172, %v181
        %v192 = vsub.f32 %v173, %v185
        %v193 = vsub.f32 %v174, %v185
        %v194 = vsub.f32 %v175, %v189
        %v195 = vsub.f32 %v176, %v189
        %v196 = vmul.f32 %v190, 1.442695
        %v197 = vpow.pop %v196
        %v198 = vmul.f32 %v191, 1.442695
        %v199 = vpow.pop %v198
        %v200 = vmul.f32 %v192, 1.442695
        %v201 = vpow.pop %v200
        %v202 = vmul.f32 %v193, 1.442695
        %v203 = vpow.pop %v202
        %v204 = vmul.f32 %v194, 1.442695
        %v205 = vpow.pop %v204
        %v206 = vmul.f32 %v195, 1.442695
        %v207 = vpow.pop %v206
        %v208 = vsel %vm177, %v199, 0.0
        %v209 = vadd.f32 %v197, %v208
        %210 = vadd.xlane.f32.xlu0 %v209
        %v211 = vpop.xlane.xlu0 %210
        %v212 = vsel %vm177, %v203, 0.0
        %v213 = vadd.f32 %v201, %v212
        %214 = vadd.xlane.f32.xlu0 %v213
        %v215 = vpop.xlane.xlu0 %214
        %v216 = vsel %vm177, %v207, 0.0
        %v217 = vadd.f32 %v205, %v216
        %218 = vadd.xlane.f32.xlu0 %v217
        %v219 = vpop.xlane.xlu0 %218
        %v220 = vrcp.pop %v211
        %v221 = vmul.f32 %v211, %v220
        %v222 = vsub.f32 1.0, %v221
        %v223 = vmul.f32 %v220, %v222
        %v224 = vadd.f32 %v220, %v223
        %vm225 = vweird.f32 %v211
        %vm226 = vweird.f32 %v220
        %vm227 = vmor %vm225, %vm226
        %v228 = vsel %vm227, %v220, %v224
        %v229 = vand.u32 2147483647, %v211
        %vm230 = vcmp.eq.f32.partialorder %v229, 8.507059e+37
        %v231 = vand.u32 %v211, 2147483648
        %v232 = vor.u32 1.1754944e-38, %v231
        %v233 = vsel %vm230, %v232, %v228
        %v234 = vmul.f32 %v197, %v233
        %v235 = vmul.f32 %v199, %v233
        %v236 = vrcp.pop %v215
        %v237 = vmul.f32 %v215, %v236
        %v238 = vsub.f32 1.0, %v237
        %v239 = vmul.f32 %v236, %v238
        %v240 = vadd.f32 %v236, %v239
        %vm241 = vweird.f32 %v215
        %vm242 = vweird.f32 %v236
        %vm243 = vmor %vm241, %vm242
        %v244 = vsel %vm243, %v236, %v240
        %v245 = vand.u32 2147483647, %v215
        %vm246 = vcmp.eq.f32.partialorder %v245, 8.507059e+37
        %v247 = vand.u32 %v215, 2147483648
        %v248 = vor.u32 1.1754944e-38, %v247
        %v249 = vsel %vm246, %v248, %v244
        %v250 = vmul.f32 %v201, %v249
        %v251 = vmul.f32 %v203, %v249
        %v252 = vrcp.pop %v219
        %v253 = vmul.f32 %v219, %v252
        %v254 = vsub.f32 1.0, %v253
        %v255 = vmul.f32 %v252, %v254
        %v256 = vadd.f32 %v252, %v255
        %vm257 = vweird.f32 %v219
        %vm258 = vweird.f32 %v252
        %vm259 = vmor %vm257, %vm258
        %v260 = vsel %vm259, %v252, %v256
        %v261 = vand.u32 2147483647, %v219
        %vm262 = vcmp.eq.f32.partialorder %v261, 8.507059e+37
        %v263 = vand.u32 %v219, 2147483648
        %v264 = vor.u32 1.1754944e-38, %v263
        %v265 = vsel %vm262, %v264, %v260
        %v266 = vmul.f32 %v205, %v265
        %v267 = vmul.f32 %v207, %v265
        %268 = vst [vmem:[%s145] sm:$0xff] %v234
        %269 = vst.msk [vmem:[%s145 + $0x8] sm:$0xff] %vm177, %v235
        %270 = vst [vmem:[%s145 + $0x10] sm:$0xff] %v250
        %271 = vst.msk [vmem:[%s145 + $0x18] sm:$0xff] %vm177, %v251
        %272 = vst [vmem:[%s145 + $0x20] sm:$0xff] %v266
        %273 = vst.msk [vmem:[%s145 + $0x28] sm:$0xff] %vm177, %v267
        %s274 = sand.u32 %s52, 1
        %s275 = scalar_lea.sflag [#allocation4], %s274
        %s276 = sand.u32 %s52, 1
        %s277 = smul.addr %s276, 48
        %s278 = scalar_lea.vmem [#allocation5], %s277
        // Predicated region
        $region29: #{tpu_custom_call.1} parent=23 // pred_check
          %p279 = pneg %p62
        $region30: #{tpu_custom_call.1} parent=23 // pred_check_branch
          %281 = sbr.rel (%p279) target = $region32
        $region31: #{tpu_custom_call.1} parent=23 // pred_region
          %s282 = smul.u32 3, %s18
          %s283 = ssub.s32 7, %s282
          %p284 = scmp.lt.s32.totalorder %s283, 3
          %s285 = scalar_select %p284, %s283, 3
          %s286 = smul.u32 8, %s285
          %s287 = smul.u32 %s286, 2
          %s288 = ssub.s32 48, %s287
          %s289 = sshll.u32 %s288, 4
          %290 = vsyncadd %s275, %s289
          %p291 = scmp.ne.s32.totalorder 0, %s287
          %s292 = smul.addr %s282, 2
          %s293 = smul.addr %s292, 8
          %s294 = scalar_lea.hbm %s1, %s293
          %s295 = smul.u32 16, %s285
          %s296 = sshll.u32 %s278, 4
          %s297 = int_to_ptr.vmem [resolvable:$true] %s296
          %s298 = sshll.u32 %s294, 4
          %s299 = int_to_ptr.hbm [resolvable:$true] %s298
          %s300 = sshll.u32 %s295, 4
          %304 = dma.vmem_to_hbm [thread:$0]  (%p291), %s297, %s300, %s299, %s275, 256, 256, 16
        $region32: #{tpu_custom_call.1} parent=23 // pred_fallthru
          _
      $region24: #{tpu_custom_call.1} parent=5 // pred_fallthru
        _
      %p305 = scmp.le.s32.totalorder 2, %s13
      // Predicated region
      $region33: #{tpu_custom_call.1} parent=5 // pred_check
        %p306 = pneg %p305
      $region34: #{tpu_custom_call.1} parent=5 // pred_check_branch
        %308 = sbr.rel (%p306) target = $region36
      $region35: #{tpu_custom_call.1} parent=5 // pred_region
        %s309 = ssub.s32 %s13, 2
        // Predicated region
        $region37: #{tpu_custom_call.1} parent=35 // pred_check
          %p310 = pneg %p68
        $region38: #{tpu_custom_call.1} parent=35 // pred_check_branch
          %312 = sbr.rel (%p310) target = $region40
        $region39: #{tpu_custom_call.1} parent=35 // pred_region
          %s313 = sand.u32 %s53, 1
          %s314 = scalar_lea.sflag [#allocation4], %s313
          %s315 = sand.u32 %s53, 1
          %s316 = smul.addr %s315, 48
          %s317 = scalar_lea.vmem [#allocation5], %s316
          %319 = dma.done %s314, 768
        $region40: #{tpu_custom_call.1} parent=35 // pred_fallthru
          _
      $region36: #{tpu_custom_call.1} parent=5 // pred_fallthru
        _
    $region6: #{tpu_custom_call.1} parent=1 // loop_footer
      %s17 = sadd.s32 1, %s13
    $region7: #{tpu_custom_call.1} parent=1 // loop_footer_branch
      %12 = sbr.rel target = $region3
    $region8: #{tpu_custom_call.1} parent=1 // loop_exit
      _
    %320 = vsyncpa [#allocation3], 1
    %s321 = scalar_lea.sflag [#allocation3], 1
    %322 = vsyncpa %s321, 1
    %323 = vsyncpa [#allocation4], 1
    %s324 = scalar_lea.sflag [#allocation4], 1
    %325 = vsyncpa %s324, 1

</llo_original>
